<compile_context>
chip_gen: v6e
topology: v6e:2x2x1
jax: 0.10.0
libtpu: 0.0.40
codegen_flags: <defaults>
</compile_context>

<pallas_src>
import jax
import jax.numpy as jnp
import numpy as np
from jax.experimental import pallas as pl
from jax.experimental.pallas import tpu as pltpu


def _round_up(x, m):
    return ((x + m - 1) // m) * m


def _graph_lstm_kernel(x_ref, h_ref, c_ref, w_ref, b_ref, out_ref, xh_ref):
    """Fused concat + single matmul + gate nonlinearities + cell/hidden update.

    x_ref  : (TILE_N, I)     input features for this node tile
    h_ref  : (TILE_N, H)     previous hidden state
    c_ref  : (TILE_N, H)     previous cell state
    w_ref  : (I+H, 4H)       linear weight, columns permuted to (i, o, f, u)
    b_ref  : (1, 4H)         bias, same permutation
    out_ref: (TILE_N, 2H)    merged [hy | cy] output block
    xh_ref : (TILE_N, I+H)   VMEM scratch for the in-kernel concat
    """
    input_size = x_ref.shape[-1]
    hsz = h_ref.shape[-1]

    # In-VMEM concat of x and h -> one fused MXU pass over the full K = I+H
    # (instead of two short-K dots plus a (TILE_N, 4H) partials add).
    xh_ref[:, :input_size] = x_ref[...]
    xh_ref[:, input_size:] = h_ref[...]

    iouf = (jnp.dot(xh_ref[...], w_ref[...], preferred_element_type=jnp.float32)
            + b_ref[...].astype(jnp.float32))

    # Columns are pre-permuted to (i, o, f, u): one wide sigmoid over the three
    # sigmoid gates and one tanh over the candidate.
    sig = jax.nn.sigmoid(iouf[:, :3 * hsz])
    u = jnp.tanh(iouf[:, 3 * hsz:])
    i = sig[:, :hsz]
    o = sig[:, hsz:2 * hsz]
    f = sig[:, 2 * hsz:]

    cy = i * u + f * c_ref[...].astype(jnp.float32)
    hy = o * jnp.tanh(cy)

    # Merged (hy | cy) block: one store / one output DMA per tile.
    out_ref[...] = jnp.concatenate([hy, cy], axis=-1).astype(out_ref.dtype)


def prepare_graph_lstm_params(weight, bias, input_size, hidden_size, dtype=None):
    """One-time parameter prep (hoist out of any timestep loop).

    weight: (4*hidden_size, input_size + hidden_size)  torch nn.Linear layout,
            row blocks in (i, o, u, f) order.
    bias  : (4*hidden_size,)
    Returns:
      w   : (I+H, 4H) with columns permuted to (i, o, f, u)
      b2d : (1, 4H) with the same permutation
    Pass dtype=jnp.bfloat16 to halve HBM bytes / double MXU rate (f32 accum
    stays inside the kernel).
    """
    assert weight.shape == (4 * hidden_size, input_size + hidden_size)
    w_t = weight.T                                   # (I+H, 4H), groups (i,o,u,f)
    wi, wo, wu, wf = jnp.split(w_t, 4, axis=1)
    w = jnp.concatenate([wi, wo, wf, wu], axis=1)    # -> (i, o, f, u)
    bi, bo, bu, bf = jnp.split(bias.reshape(-1), 4)
    b2d = jnp.concatenate([bi, bo, bf, bu]).reshape(1, -1)
    if dtype is not None:
        w = w.astype(dtype)
        b2d = b2d.astype(dtype)
    return w, b2d


def _vmem_bytes(input_size, hidden_size, itemsize):
    """(per_row, fixed) VMEM bytes: double-buffered activation & merged-output
    blocks, the xh concat scratch, the f32 iouf intermediate, f32 gate/cy/hy
    temporaries, and the resident weight/bias (counted x2 to be safe)."""
    k = input_size + hidden_size
    four_h = 4 * hidden_size
    fixed = (k * four_h + four_h) * itemsize * 2
    per_row = ((input_size + 2 * hidden_size) * itemsize * 2   # x/h/c blocks (x2 buffers)
               + 2 * hidden_size * itemsize * 2                # merged output block (x2)
               + k * itemsize                                  # xh scratch
               + four_h * 4                                    # f32 iouf
               + 6 * hidden_size * 4)                          # f32 gate temporaries
    return per_row, fixed


def _default_tile_n(n, input_size, hidden_size, *, itemsize=4, sublane=8,
                    vmem_budget_bytes=24 * 1024 * 1024):
    """Biggest node tile that fits a conservative VMEM budget (safe under the
    v7x 32 MiB scoped default), rounded to the sublane multiple, capped at
    4096 rows, and trimmed so the 'parallel' grid has >= 2 steps whenever the
    problem is big enough for v7x megacore to split it across both cores."""
    per_row, fixed = _vmem_bytes(input_size, hidden_size, itemsize)
    avail = max(vmem_budget_bytes - fixed, per_row * sublane)
    tile = int(avail // per_row // sublane) * sublane
    tile = max(sublane, min(4096, tile))
    n_up = max(sublane, _round_up(n, sublane))
    tile = min(tile, n_up)
    if tile >= n_up and n_up >= 2 * sublane:
        tile = _round_up((n_up + 1) // 2, sublane)
    return tile


def graph_lstm_cell(input_data, hidden_state, params, hidden_size, *, tile_n=None):
    """Pallas implementation of GraphLSTMCell.forward.

    input_data  : (N, input_size)
    hidden_state: None or (h, c), each (N, hidden_size)
    params      : output of prepare_graph_lstm_params (gate-permuted weight/bias)
    Returns (hy, cy), each (N, hidden_size).
    """
    w, b_2d = params
    n, input_size = input_data.shape
    dtype = input_data.dtype
    itemsize = np.dtype(dtype).itemsize
    sublane = max(8, 32 // itemsize)      # 8 rows for f32, 16 for bf16
    k = input_size + hidden_size
    four_h = 4 * hidden_size
    assert w.shape == (k, four_h)

    # No-op when prepare_graph_lstm_params was called with the matching dtype.
    w = w.astype(dtype)

    if hidden_state is None:
        h_prev = jnp.zeros((n, hidden_size), dtype=dtype)
        c_prev = jnp.zeros((n, hidden_size), dtype=dtype)
    else:
        h_prev, c_prev = hidden_state

    if tile_n is None:
        tile_n = _default_tile_n(n, input_size, hidden_size,
                                 itemsize=itemsize, sublane=sublane)
    tile_n = max(sublane, _round_up(int(tile_n), sublane))
    tile_n = min(tile_n, max(sublane, _round_up(n, sublane)))

    # Ragged tail handled by the pipeline (boundary blocks are clipped); no
    # wrapper-side jnp.pad of the activations and no output re-slice copy.
    grid = (pl.cdiv(n, tile_n),)

    per_row, fixed = _vmem_bytes(input_size, hidden_size, itemsize)
    vmem_limit = int(min(64 * 1024 * 1024,
                         max(32 * 1024 * 1024, 2 * (fixed + per_row * tile_n))))

    out = pl.pallas_call(
        _graph_lstm_kernel,
        out_shape=jax.ShapeDtypeStruct((n, 2 * hidden_size), dtype),
        grid=grid,
        in_specs=[
            pl.BlockSpec((tile_n, input_size), lambda i: (i, 0)),   # x tile
            pl.BlockSpec((tile_n, hidden_size), lambda i: (i, 0)),  # h tile
            pl.BlockSpec((tile_n, hidden_size), lambda i: (i, 0)),  # c tile
            pl.BlockSpec((k, four_h), lambda i: (0, 0)),            # W (VMEM-resident)
            pl.BlockSpec((1, four_h), lambda i: (0, 0)),            # bias (resident)
        ],
        out_specs=pl.BlockSpec((tile_n, 2 * hidden_size), lambda i: (i, 0)),
        scratch_shapes=[pltpu.VMEM((tile_n, k), dtype)],            # xh concat
        compiler_params=pltpu.CompilerParams(
            dimension_semantics=("parallel",),
            vmem_limit_bytes=vmem_limit),
    )(input_data, h_prev, c_prev, w, b_2d)

    hy = out[:, :hidden_size]
    cy = out[:, hidden_size:]
    return hy, cy


def _reference(input_data, hidden_state, weight, bias, hidden_size):
    """Pure-JAX reference matching the PyTorch forward exactly."""
    n = input_data.shape[0]
    if hidden_state is None:
        h_prev = jnp.zeros((n, hidden_size), dtype=input_data.dtype)
        c_prev = jnp.zeros((n, hidden_size), dtype=input_data.dtype)
    else:
        h_prev, c_prev = hidden_state
    x = jnp.concatenate([input_data, h_prev], axis=-1)
    iouf = x @ weight.T + bias
    i, o, u, f = jnp.split(iouf, 4, axis=-1)
    i, o, u, f = jax.nn.sigmoid(i), jax.nn.sigmoid(o), jnp.tanh(u), jax.nn.sigmoid(f)
    cy = i * u + f * c_prev
    hy = o * jnp.tanh(cy)
    return hy, cy


if __name__ == "__main__":
    # N (graph nodes) = 22 (non-multiple of 8 -> exercises the ragged tail),
    # input_size = 16, hidden_size = 32.
    N, INPUT_SIZE, HIDDEN_SIZE = 22, 16, 32
    D = INPUT_SIZE + HIDDEN_SIZE

    key = jax.random.PRNGKey(0)
    k_x, k_h, k_c, k_w, k_b = jax.random.split(key, 5)

    input_data = jax.random.normal(k_x, (N, INPUT_SIZE), dtype=jnp.float32)
    h_prev = jax.random.normal(k_h, (N, HIDDEN_SIZE), dtype=jnp.float32)
    c_prev = jax.random.normal(k_c, (N, HIDDEN_SIZE), dtype=jnp.float32)

    # Deterministic nn.Linear-style init: U(-1/sqrt(fan_in), 1/sqrt(fan_in)).
    bound = 1.0 / jnp.sqrt(jnp.float32(D))
    weight = jax.random.uniform(k_w, (4 * HIDDEN_SIZE, D),
                                minval=-bound, maxval=bound, dtype=jnp.float32)
    bias = jax.random.uniform(k_b, (4 * HIDDEN_SIZE,),
                              minval=-bound, maxval=bound, dtype=jnp.float32)

    # One-time parameter prep (transpose / gate permutation hoisted out).
    params = prepare_graph_lstm_params(weight, bias, INPUT_SIZE, HIDDEN_SIZE)

    # Explicit small tile -> ragged grid (cdiv(22, 8) = 3) with no wrapper pad.
    hy, cy = graph_lstm_cell(input_data, (h_prev, c_prev), params,
                             HIDDEN_SIZE, tile_n=8)
    jax.block_until_ready((hy, cy))

    # Default (VMEM-budgeted, >=2-step) tile and hidden_state=None.
    hy0, cy0 = graph_lstm_cell(input_data, None, params, HIDDEN_SIZE)
    jax.block_until_ready((hy0, cy0))

    # Correctness vs. the pure-JAX reference (original gate order).
    hy_ref, cy_ref = _reference(input_data, (h_prev, c_prev), weight, bias, HIDDEN_SIZE)
    hy0_ref, cy0_ref = _reference(input_data, None, weight, bias, HIDDEN_SIZE)

    assert hy.shape == (N, HIDDEN_SIZE) and cy.shape == (N, HIDDEN_SIZE)
    assert jnp.allclose(hy, hy_ref, atol=1e-5, rtol=1e-5)
    assert jnp.allclose(cy, cy_ref, atol=1e-5, rtol=1e-5)
    assert jnp.allclose(hy0, hy0_ref, atol=1e-5, rtol=1e-5)
    assert jnp.allclose(cy0, cy0_ref, atol=1e-5, rtol=1e-5)

    # bf16 activations/weights (f32 MXU accumulation + f32 gate math in-kernel).
    params_bf16 = prepare_graph_lstm_params(weight, bias, INPUT_SIZE, HIDDEN_SIZE,
                                            dtype=jnp.bfloat16)
    x_b = input_data.astype(jnp.bfloat16)
    h_b = h_prev.astype(jnp.bfloat16)
    c_b = c_prev.astype(jnp.bfloat16)
    hy_b, cy_b = graph_lstm_cell(x_b, (h_b, c_b), params_bf16, HIDDEN_SIZE)
    jax.block_until_ready((hy_b, cy_b))

    hy_bref, cy_bref = _reference(
        x_b.astype(jnp.float32),
        (h_b.astype(jnp.float32), c_b.astype(jnp.float32)),
        weight.astype(jnp.bfloat16).astype(jnp.float32),
        bias.astype(jnp.bfloat16).astype(jnp.float32),
        HIDDEN_SIZE)
    assert jnp.allclose(hy_b.astype(jnp.float32), hy_bref, atol=3e-2, rtol=3e-2)
    assert jnp.allclose(cy_b.astype(jnp.float32), cy_bref, atol=3e-2, rtol=3e-2)

    print("KERNEL_OK")
</pallas_src>

<mosaic_0001>
module attributes {stable_mosaic.version = 11 : i64} {
  func.func @_graph_lstm_kernel(%arg0: i32, %arg1: memref<8x16xf32, #tpu.memory_space<vmem>>, %arg2: memref<8x32xf32, #tpu.memory_space<vmem>>, %arg3: memref<8x32xf32, #tpu.memory_space<vmem>>, %arg4: memref<48x128xf32, #tpu.memory_space<vmem>>, %arg5: memref<1x128xf32, #tpu.memory_space<vmem>>, %arg6: memref<8x64xf32, #tpu.memory_space<vmem>>, %arg7: memref<8x48xf32, #tpu.memory_space<vmem>>) attributes {dimension_semantics = [#tpu.dimension_semantics<parallel>], iteration_bounds = array<i64: 3>, scalar_prefetch = 0 : i64, scratch_operands = 1 : i64, tpu.core_type = #tpu.core_type<tc>, window_params = [{transform_indices = @transform_0, window_bounds = array<i64: 8, 16>}, {transform_indices = @transform_1, window_bounds = array<i64: 8, 32>}, {transform_indices = @transform_2, window_bounds = array<i64: 8, 32>}, {pipeline_mode = #tpu.pipeline_mode<synchronous>, transform_indices = @transform_3, window_bounds = array<i64: 48, 128>}, {pipeline_mode = #tpu.pipeline_mode<synchronous>, transform_indices = @transform_4, window_bounds = array<i64: 1, 128>}, {transform_indices = @transform_5, window_bounds = array<i64: 8, 64>}]} {
    %c0 = arith.constant 0 : index
    %c0_0 = arith.constant 0 : index
    %0 = vector.load %arg1[%c0, %c0_0] : memref<8x16xf32, #tpu.memory_space<vmem>>, vector<8x16xf32>
    %c0_1 = arith.constant 0 : index
    %c0_2 = arith.constant 0 : index
    %1 = vector.load %arg7[%c0_1, %c0_2] : memref<8x48xf32, #tpu.memory_space<vmem>>, vector<8x16xf32>
    tpu.vector_store %arg7[%c0_1, %c0_2], %0 {strides = array<i32>} : memref<8x48xf32, #tpu.memory_space<vmem>>, vector<8x16xf32>,
    %c0_3 = arith.constant 0 : index
    %c0_4 = arith.constant 0 : index
    %2 = vector.load %arg2[%c0_3, %c0_4] : memref<8x32xf32, #tpu.memory_space<vmem>>, vector<8x32xf32>
    %c0_5 = arith.constant 0 : index
    %c16 = arith.constant 16 : index
    %3 = vector.load %arg7[%c0_5, %c16] : memref<8x48xf32, #tpu.memory_space<vmem>>, vector<8x32xf32>
    tpu.vector_store %arg7[%c0_5, %c16], %2 {strides = array<i32>} : memref<8x48xf32, #tpu.memory_space<vmem>>, vector<8x32xf32>,
    %c0_6 = arith.constant 0 : index
    %c0_7 = arith.constant 0 : index
    %4 = vector.load %arg7[%c0_6, %c0_7] : memref<8x48xf32, #tpu.memory_space<vmem>>, vector<8x48xf32>
    %c0_8 = arith.constant 0 : index
    %c0_9 = arith.constant 0 : index
    %5 = vector.load %arg4[%c0_8, %c0_9] : memref<48x128xf32, #tpu.memory_space<vmem>>, vector<48x128xf32>
    %cst = arith.constant dense<0.000000e+00> : vector<8x128xf32>
    %6 = tpu.matmul %4, %5, %cst {dimension_numbers = #tpu.dot_dimension_numbers<[1], [0], [0], [1], [0, 0, 1, 1], [], []>} : vector<8x48xf32>, vector<48x128xf32>, vector<8x128xf32> -> vector<8x128xf32>
    %c0_10 = arith.constant 0 : index
    %c0_11 = arith.constant 0 : index
    %7 = vector.load %arg5[%c0_10, %c0_11] : memref<1x128xf32, #tpu.memory_space<vmem>>, vector<1x128xf32>
    %8 = vector.broadcast %7 : vector<1x128xf32> to vector<8x128xf32>
    %9 = arith.addf %6, %8 : vector<8x128xf32>
    %10 = vector.extract_strided_slice %9 {offsets = [0, 0], sizes = [8, 96], strides = [1, 1]} : vector<8x128xf32> to vector<8x96xf32>
    %11 = arith.negf %10 : vector<8x96xf32>
    %12 = math.exp %11 : vector<8x96xf32>
    %cst_12 = arith.constant 1.000000e+00 : f32
    %13 = vector.broadcast %cst_12 : f32 to vector<8x96xf32>
    %14 = arith.addf %13, %12 : vector<8x96xf32>
    %15 = arith.divf %13, %14 : vector<8x96xf32>
    %16 = vector.extract_strided_slice %9 {offsets = [0, 96], sizes = [8, 32], strides = [1, 1]} : vector<8x128xf32> to vector<8x32xf32>
    %17 = math.tanh %16 : vector<8x32xf32>
    %18 = vector.extract_strided_slice %15 {offsets = [0, 0], sizes = [8, 32], strides = [1, 1]} : vector<8x96xf32> to vector<8x32xf32>
    %19 = vector.extract_strided_slice %15 {offsets = [0, 32], sizes = [8, 32], strides = [1, 1]} : vector<8x96xf32> to vector<8x32xf32>
    %20 = vector.extract_strided_slice %15 {offsets = [0, 64], sizes = [8, 32], strides = [1, 1]} : vector<8x96xf32> to vector<8x32xf32>
    %21 = arith.mulf %18, %17 : vector<8x32xf32>
    %c0_13 = arith.constant 0 : index
    %c0_14 = arith.constant 0 : index
    %22 = vector.load %arg3[%c0_13, %c0_14] : memref<8x32xf32, #tpu.memory_space<vmem>>, vector<8x32xf32>
    %23 = arith.mulf %20, %22 : vector<8x32xf32>
    %24 = arith.addf %21, %23 : vector<8x32xf32>
    %25 = math.tanh %24 : vector<8x32xf32>
    %26 = arith.mulf %19, %25 : vector<8x32xf32>
    %27 = tpu.concatenate %26, %24 in 1 : vector<8x32xf32>, vector<8x32xf32> -> vector<8x64xf32>
    %c0_15 = arith.constant 0 : index
    %c0_16 = arith.constant 0 : index
    %28 = vector.load %arg6[%c0_15, %c0_16] : memref<8x64xf32, #tpu.memory_space<vmem>>, vector<8x64xf32>
    tpu.vector_store %arg6[%c0_15, %c0_16], %27 {strides = array<i32>} : memref<8x64xf32, #tpu.memory_space<vmem>>, vector<8x64xf32>,
    return
  }
  func.func @transform_0(%arg0: i32) -> (i32, i32) {
    %c0_i32 = arith.constant 0 : i32
    %c0_i32_0 = arith.constant 0 : i32
    return %arg0, %c0_i32 : i32, i32
  }
  func.func @transform_1(%arg0: i32) -> (i32, i32) {
    %c0_i32 = arith.constant 0 : i32
    %c0_i32_0 = arith.constant 0 : i32
    return %arg0, %c0_i32 : i32, i32
  }
  func.func @transform_2(%arg0: i32) -> (i32, i32) {
    %c0_i32 = arith.constant 0 : i32
    %c0_i32_0 = arith.constant 0 : i32
    return %arg0, %c0_i32 : i32, i32
  }
  func.func @transform_3(%arg0: i32) -> (i32, i32) {
    %c0_i32 = arith.constant 0 : i32
    %c0_i32_0 = arith.constant 0 : i32
    %c0_i32_1 = arith.constant 0 : i32
    return %c0_i32, %c0_i32_0 : i32, i32
  }
  func.func @transform_4(%arg0: i32) -> (i32, i32) {
    %c0_i32 = arith.constant 0 : i32
    %c0_i32_0 = arith.constant 0 : i32
    %c0_i32_1 = arith.constant 0 : i32
    return %c0_i32, %c0_i32_0 : i32, i32
  }
  func.func @transform_5(%arg0: i32) -> (i32, i32) {
    %c0_i32 = arith.constant 0 : i32
    %c0_i32_0 = arith.constant 0 : i32
    return %arg0, %c0_i32 : i32, i32
  }
}

</mosaic_0001>

<llo_original>
// kernel: tpu_custom_call.1
$region0: #{tpu_custom_call.1}
  #allocation0 [shape = 'u32[]', space=smem, size = 0x4, offset = 0x4, fixed_abs, tag = 'smem constant byte address 0x4 - core index']
  #allocation1 [shape = 'u32[144,128]{1,0:T(1,128)}', space=vmem, size = 0x12000, scoped, tag = 'internal scratch']
  #allocation2 [shape = 'f32[8,48]{1,0:T(8,128)}', space=vmem, size = 0x1000, scoped, tag = 'scratch operand']
  %s0 = inlined_call_operand.vmem [shape: f32[22,16], index: 0, kind: input, shape index: {}]
  %s1 = inlined_call_operand.vmem [shape: f32[22,32], index: 1, kind: input, shape index: {}]
  %s2 = inlined_call_operand.hbm [shape: f32[22,32], index: 2, kind: input, shape index: {}]
  %s3 = inlined_call_operand.hbm [shape: f32[48,128], index: 3, kind: input, shape index: {}]
  %s4 = inlined_call_operand.vmem [shape: f32[1,128], index: 4, kind: input, shape index: {}]
  %s5 = inlined_call_operand.hbm [shape: f32[22,64], index: 5, kind: output, shape index: {}]
  %s6 = sld [smem:[#allocation0]]
  $region61: #{tpu_custom_call.1} parent=0
    _
  %s8 = ssub.s32 1, %s6
  %s9 = scalar_select 0, %s8, %s6
  $region1: #{tpu_custom_call.1} parent=0
    #allocation3 [shape = 'u8[8192]{0}', space=vmem, size = 0x2000, scoped, tag = 'input window, operand 2']
    #allocation4 [shape = 's32[2]{0}', space=sflag, size = 0x8, scoped, tag = 'scoped memory for tpu_custom_call.1']
    #allocation5 [shape = 's32[2]{0}', space=sflag, size = 0x8, scoped, tag = 'scoped memory for tpu_custom_call.1']
    #allocation6 [shape = 'u8[24576]{0}', space=vmem, size = 0x6000, scoped, tag = 'input window, operand 3, single buffered']
    #allocation7 [shape = 's32[1]{0}', space=sflag, size = 0x4, scoped, tag = 'scoped memory for tpu_custom_call.1']
    #allocation8 [shape = 'u8[8192]{0}', space=vmem, size = 0x2000, scoped, tag = 'output window, operand 0']
    %10 = vsyncpa [#allocation4], 0
    %s11 = scalar_lea.sflag [#allocation4], 1
    %12 = vsyncpa %s11, 0
    %13 = vsyncpa [#allocation7], 0
    %14 = vsyncpa [#allocation5], 0
    %s15 = scalar_lea.sflag [#allocation5], 1
    %16 = vsyncpa %s15, 0
    loop: start=0, step=1, limit=5
    $region2: #{tpu_custom_call.1} parent=1 // loop_pre_header
      _
    $region3: #{tpu_custom_call.1} parent=1 // loop_header
      %s18 = sphi 0, %s22
      %p19 = scmp.ge.s32.totalorder %s18, 5
      %s28 = sphi 0, %s30
      %s31 = sphi 0, %s28
      %s32 = sphi 0, %s31
      %s48 = sphi 0, %s32
      %s54 = sphi 0, %s56
      %s57 = sphi 0, %s54
      %s58 = sphi 0, %s57
      %s74 = sphi 0, %s58
      %s80 = sphi 0, %s82
      %s83 = sphi 0, %s80
      %s84 = sphi 0, %s83
      %s100 = sphi 0, %s84
      %s104 = sphi 0, %s104
      %s106 = sphi 0, %s104
      %s107 = sphi 0, %s106
      %s121 = sphi 0, %s107
      %s125 = sphi 0, %s125
      %s127 = sphi 0, %s125
      %s128 = sphi 0, %s127
      %s142 = sphi 0, %s128
      %s148 = sphi 0, %s150
      %s151 = sphi 0, %s148
      %s152 = sphi 0, %s151
      %s168 = sphi 0, %s152
    $region4: #{tpu_custom_call.1} parent=1 // loop_header_branch
      %21 = sbr.rel (%p19) target = $region8
    $region5: #{tpu_custom_call.1} parent=1 // loop_body
      %s23 = ssub.s32 %s18, 1
      %s24 = ssub.s32 %s18, 2
      %s25 = sadd.s32 %s18, 1
      %s26 = ssub.s32 %s18, %s25
      %p27 = scmp.eq.s32.totalorder %s26, 0
      %s29 = sadd.s32 %s28, 1
      %s30 = scalar_select %p27, %s28, %s29
      %p33 = pneg %p27
      %p34 = scmp.eq.s32.totalorder %s18, 2
      %p35 = por %p33, %p34
      %p36 = scmp.ne.s32.totalorder %s28, %s31
      %p37 = scmp.eq.s32.totalorder %s18, 0
      %p38 = por %p36, %p37
      %p39 = scmp.ne.s32.totalorder %s28, %s31
      %p40 = scmp.eq.s32.totalorder %s23, 2
      %p41 = por %p39, %p40
      %p42 = scmp.ne.s32.totalorder %s31, %s32
      %p43 = scmp.eq.s32.totalorder %s23, 0
      %p44 = por %p42, %p43
      %p45 = scmp.ne.s32.totalorder %s31, %s32
      %p46 = scmp.eq.s32.totalorder %s24, 2
      %p47 = por %p45, %p46
      %p49 = scmp.ne.s32.totalorder %s32, %s48
      %p50 = scmp.eq.s32.totalorder %s24, 0
      %p51 = por %p49, %p50
      %s52 = ssub.s32 %s18, %s25
      %p53 = scmp.eq.s32.totalorder %s52, 0
      %s55 = sadd.s32 %s54, 1
      %s56 = scalar_select %p53, %s54, %s55
      %p59 = pneg %p53
      %p60 = scmp.eq.s32.totalorder %s18, 2
      %p61 = por %p59, %p60
      %p62 = scmp.ne.s32.totalorder %s54, %s57
      %p63 = scmp.eq.s32.totalorder %s18, 0
      %p64 = por %p62, %p63
      %p65 = scmp.ne.s32.totalorder %s54, %s57
      %p66 = scmp.eq.s32.totalorder %s23, 2
      %p67 = por %p65, %p66
      %p68 = scmp.ne.s32.totalorder %s57, %s58
      %p69 = scmp.eq.s32.totalorder %s23, 0
      %p70 = por %p68, %p69
      %p71 = scmp.ne.s32.totalorder %s57, %s58
      %p72 = scmp.eq.s32.totalorder %s24, 2
      %p73 = por %p71, %p72
      %p75 = scmp.ne.s32.totalorder %s58, %s74
      %p76 = scmp.eq.s32.totalorder %s24, 0
      %p77 = por %p75, %p76
      %s78 = ssub.s32 %s18, %s25
      %p79 = scmp.eq.s32.totalorder %s78, 0
      %s81 = sadd.s32 %s80, 1
      %s82 = scalar_select %p79, %s80, %s81
      %p85 = pneg %p79
      %p86 = scmp.eq.s32.totalorder %s18, 2
      %p87 = por %p85, %p86
      %p88 = scmp.ne.s32.totalorder %s80, %s83
      %p89 = scmp.eq.s32.totalorder %s18, 0
      %p90 = por %p88, %p89
      %p91 = scmp.ne.s32.totalorder %s80, %s83
      %p92 = scmp.eq.s32.totalorder %s23, 2
      %p93 = por %p91, %p92
      %p94 = scmp.ne.s32.totalorder %s83, %s84
      %p95 = scmp.eq.s32.totalorder %s23, 0
      %p96 = por %p94, %p95
      %p97 = scmp.ne.s32.totalorder %s83, %s84
      %p98 = scmp.eq.s32.totalorder %s24, 2
      %p99 = por %p97, %p98
      %p101 = scmp.ne.s32.totalorder %s84, %s100
      %p102 = scmp.eq.s32.totalorder %s24, 0
      %p103 = por %p101, %p102
      %s105 = sadd.s32 %s104, 1
      %p108 = scmp.eq.s32.totalorder %s18, 2
      %p109 = scmp.ne.s32.totalorder %s104, %s106
      %p110 = scmp.eq.s32.totalorder %s18, 0
      %p111 = por %p109, %p110
      %p112 = scmp.ne.s32.totalorder %s104, %s106
      %p113 = scmp.eq.s32.totalorder %s23, 2
      %p114 = por %p112, %p113
      %p115 = scmp.ne.s32.totalorder %s106, %s107
      %p116 = scmp.eq.s32.totalorder %s23, 0
      %p117 = por %p115, %p116
      %p118 = scmp.ne.s32.totalorder %s106, %s107
      %p119 = scmp.eq.s32.totalorder %s24, 2
      %p120 = por %p118, %p119
      %p122 = scmp.ne.s32.totalorder %s107, %s121
      %p123 = scmp.eq.s32.totalorder %s24, 0
      %p124 = por %p122, %p123
      %s126 = sadd.s32 %s125, 1
      %p129 = scmp.eq.s32.totalorder %s18, 2
      %p130 = scmp.ne.s32.totalorder %s125, %s127
      %p131 = scmp.eq.s32.totalorder %s18, 0
      %p132 = por %p130, %p131
      %p133 = scmp.ne.s32.totalorder %s125, %s127
      %p134 = scmp.eq.s32.totalorder %s23, 2
      %p135 = por %p133, %p134
      %p136 = scmp.ne.s32.totalorder %s127, %s128
      %p137 = scmp.eq.s32.totalorder %s23, 0
      %p138 = por %p136, %p137
      %p139 = scmp.ne.s32.totalorder %s127, %s128
      %p140 = scmp.eq.s32.totalorder %s24, 2
      %p141 = por %p139, %p140
      %p143 = scmp.ne.s32.totalorder %s128, %s142
      %p144 = scmp.eq.s32.totalorder %s24, 0
      %p145 = por %p143, %p144
      %s146 = ssub.s32 %s18, %s25
      %p147 = scmp.eq.s32.totalorder %s146, 0
      %s149 = sadd.s32 %s148, 1
      %s150 = scalar_select %p147, %s148, %s149
      %p153 = pneg %p147
      %p154 = scmp.eq.s32.totalorder %s18, 2
      %p155 = por %p153, %p154
      %p156 = scmp.ne.s32.totalorder %s148, %s151
      %p157 = scmp.eq.s32.totalorder %s18, 0
      %p158 = por %p156, %p157
      %p159 = scmp.ne.s32.totalorder %s148, %s151
      %p160 = scmp.eq.s32.totalorder %s23, 2
      %p161 = por %p159, %p160
      %p162 = scmp.ne.s32.totalorder %s151, %s152
      %p163 = scmp.eq.s32.totalorder %s23, 0
      %p164 = por %p162, %p163
      %p165 = scmp.ne.s32.totalorder %s151, %s152
      %p166 = scmp.eq.s32.totalorder %s24, 2
      %p167 = por %p165, %p166
      %p169 = scmp.ne.s32.totalorder %s152, %s168
      %p170 = scmp.eq.s32.totalorder %s24, 0
      %p171 = por %p169, %p170
      %p172 = scmp.le.s32.totalorder 1, %s18
      %p173 = scmp.lt.s32.totalorder %s18, 4
      %p174 = pnand %p172, %p173
      %p175 = pneg %p174
      // Predicated region
      $region9: #{tpu_custom_call.1} parent=5 // pred_check
        _
      $region10: #{tpu_custom_call.1} parent=5 // pred_check_branch
        %177 = sbr.rel (%p174) target = $region12
      $region11: #{tpu_custom_call.1} parent=5 // pred_region
        %s178 = ssub.s32 %s18, 1
        // Predicated region
        $region13: #{tpu_custom_call.1} parent=11 // pred_check
          %p179 = pneg %p117
        $region14: #{tpu_custom_call.1} parent=11 // pred_check_branch
          %181 = sbr.rel (%p179) target = $region16
        $region15: #{tpu_custom_call.1} parent=11 // pred_region
          %s183 = ssub.s32 768, 768
          %184 = vsyncadd [#allocation7], %s183
          %s185 = sshll.u32 [#allocation6], 4
          %s186 = int_to_ptr.vmem [resolvable:$true] %s185
          %191 = dma.hbm_to_vmem [thread:$0]  %s3, 768, %s186, [#allocation7], 128, 128, 8
        $region16: #{tpu_custom_call.1} parent=11 // pred_fallthru
          _
        // Predicated region
        $region17: #{tpu_custom_call.1} parent=11 // pred_check
          %p192 = pneg %p138
        $region18: #{tpu_custom_call.1} parent=11 // pred_check_branch
          %194 = sbr.rel (%p192) target = $region20
        $region19: #{tpu_custom_call.1} parent=11 // pred_region
          _
        $region20: #{tpu_custom_call.1} parent=11 // pred_fallthru
          _
      $region12: #{tpu_custom_call.1} parent=5 // pred_fallthru
        _
      %p195 = scmp.lt.s32.totalorder %s18, 3
      // Predicated region
      $region21: #{tpu_custom_call.1} parent=5 // pred_check
        %p196 = pneg %p195
      $region22: #{tpu_custom_call.1} parent=5 // pred_check_branch
        %198 = sbr.rel (%p196) target = $region24
      $region23: #{tpu_custom_call.1} parent=5 // pred_region
        // Predicated region
        $region25: #{tpu_custom_call.1} parent=23 // pred_check
          %p199 = pneg %p38
        $region26: #{tpu_custom_call.1} parent=23 // pred_check_branch
          %201 = sbr.rel (%p199) target = $region28
        $region27: #{tpu_custom_call.1} parent=23 // pred_region
          %p202 = scmp.lt.s32.totalorder %s18, 2
          %s203 = scalar_select %p202, %s18, 2
          %s204 = smul.addr %s203, 8
          %s205 = scalar_lea.vmem %s0, %s204
        $region28: #{tpu_custom_call.1} parent=23 // pred_fallthru
          _
        // Predicated region
        $region29: #{tpu_custom_call.1} parent=23 // pred_check
          %p206 = pneg %p64
        $region30: #{tpu_custom_call.1} parent=23 // pred_check_branch
          %208 = sbr.rel (%p206) target = $region32
        $region31: #{tpu_custom_call.1} parent=23 // pred_region
          %p209 = scmp.lt.s32.totalorder %s18, 2
          %s210 = scalar_select %p209, %s18, 2
          %s211 = smul.addr %s210, 8
          %s212 = scalar_lea.vmem %s1, %s211
        $region32: #{tpu_custom_call.1} parent=23 // pred_fallthru
          _
        // Predicated region
        $region33: #{tpu_custom_call.1} parent=23 // pred_check
          %p213 = pneg %p90
        $region34: #{tpu_custom_call.1} parent=23 // pred_check_branch
          %215 = sbr.rel (%p213) target = $region36
        $region35: #{tpu_custom_call.1} parent=23 // pred_region
          %s216 = sand.u32 %s80, 1
          %s217 = scalar_lea.sflag [#allocation4], %s216
          %s218 = sand.u32 %s80, 1
          %s219 = smul.addr %s218, 8
          %s220 = scalar_lea.vmem [#allocation3], %s219
          %s222 = ssub.s32 128, 128
          %223 = vsyncadd %s217, %s222
          %s224 = smul.addr %s18, 128
          %s225 = scalar_lea.hbm %s2, %s224
          %s227 = sshll.u32 %s220, 4
          %s228 = int_to_ptr.vmem [resolvable:$true] %s227
          %230 = dma.hbm_to_vmem [thread:$0]  %s225, 128, %s228, %s217
        $region36: #{tpu_custom_call.1} parent=23 // pred_fallthru
          _
      $region24: #{tpu_custom_call.1} parent=5 // pred_fallthru
        _
      %p231 = scmp.le.s32.totalorder 1, %s18
      %p232 = scmp.lt.s32.totalorder %s18, 4
      %p233 = pnand %p231, %p232
      %p234 = pneg %p233
      // Predicated region
      $region37: #{tpu_custom_call.1} parent=5 // pred_check
        _
      $region38: #{tpu_custom_call.1} parent=5 // pred_check_branch
        %236 = sbr.rel (%p233) target = $region40
      $region39: #{tpu_custom_call.1} parent=5 // pred_region
        %s237 = ssub.s32 %s18, 1
        %s238 = sand.u32 %s83, 1
        %s239 = scalar_lea.sflag [#allocation4], %s238
        %s240 = sand.u32 %s83, 1
        %s241 = smul.addr %s240, 8
        %s242 = scalar_lea.vmem [#allocation3], %s241
        // Predicated region
        $region41: #{tpu_custom_call.1} parent=39 // pred_check
          %p243 = pneg %p96
        $region42: #{tpu_custom_call.1} parent=39 // pred_check_branch
          %245 = sbr.rel (%p243) target = $region44
        $region43: #{tpu_custom_call.1} parent=39 // pred_region
          %246 = dma.done %s239, 128
        $region44: #{tpu_custom_call.1} parent=39 // pred_fallthru
          _
        // Predicated region
        $region45: #{tpu_custom_call.1} parent=39 // pred_check
          %p247 = pneg %p117
        $region46: #{tpu_custom_call.1} parent=39 // pred_check_branch
          %249 = sbr.rel (%p247) target = $region48
        $region47: #{tpu_custom_call.1} parent=39 // pred_region
          %250 = dma.done [#allocation7], 768
        $region48: #{tpu_custom_call.1} parent=39 // pred_fallthru
          _
        %p251 = scmp.lt.s32.totalorder %s23, 2
        %s252 = scalar_select %p251, %s23, 2
        %s253 = smul.addr %s252, 8
        %s254 = scalar_lea.vmem %s0, %s253
        %p255 = pneg %p44
        %p256 = pneg %p41
        %p257 = scmp.lt.s32.totalorder %s23, 2
        %s258 = scalar_select %p257, %s23, 2
        %s259 = smul.addr %s258, 8
        %s260 = scalar_lea.vmem %s1, %s259
        %p261 = pneg %p70
        %p262 = pneg %p67
        %s263 = sand.u32 %s83, 1
        %s264 = scalar_lea.sflag [#allocation4], %s263
        %s265 = sand.u32 %s83, 1
        %s266 = smul.addr %s265, 8
        %s267 = scalar_lea.vmem [#allocation3], %s266
        %p268 = pneg %p96
        %p269 = pneg %p93
        %p270 = pneg %p117
        %p271 = pneg %p114
        %p272 = pneg %p138
        %p273 = pneg %p135
        %p274 = pneg %p164
        %p275 = pneg %p161
        %s276 = sand.u32 %s151, 1
        %s277 = scalar_lea.sflag [#allocation5], %s276
        %s278 = sand.u32 %s151, 1
        %s279 = smul.addr %s278, 8
        %s280 = scalar_lea.vmem [#allocation8], %s279
        %p281 = scmp.lt.s32.totalorder %s23, 2
        %s282 = scalar_select %p281, %s23, 2
        %s283 = smul.addr %s282, 8
        %s284 = scalar_lea.vmem %s0, %s283
        %p285 = scmp.lt.s32.totalorder %s23, 2
        %s286 = scalar_select %p285, %s23, 2
        %s287 = smul.addr %s286, 8
        %s288 = scalar_lea.vmem %s1, %s287
        %v289 = vld [vmem:[%s284] sm:$0xff]
        %vm290 = vcmask 130048
        %291 = vst.msk [vmem:[#allocation2] sm:$0xff] %vm290, %v289
        %v292 = vld [vmem:[%s288] sm:$0xff]
        %294 = vrot.lane.b32.xlu0 %v292, 16
        %v295 = vpop.permute.xlu0 %294
        %vm297 = vcmask 392320
        %298 = vst.msk [vmem:[#allocation2] sm:$0xff] %vm297, %v295
        %v299 = vld [vmem:[#allocation2] sm:$0xff]
        %v300 = vld [vmem:[#allocation6] sm:$0xff]
        %v301 = vld [vmem:[#allocation6 + $0x8] sm:$0xff]
        %v302 = vld [vmem:[#allocation6 + $0x10] sm:$0xff]
        %v303 = vld [vmem:[#allocation6 + $0x18] sm:$0xff]
        %v304 = vld [vmem:[#allocation6 + $0x20] sm:$0xff]
        %v305 = vld [vmem:[#allocation6 + $0x28] sm:$0xff]
        %v306 = vld [vmem:[%s4] sm:$0x1]
        %v308 = vlaneseq
        %v309 = vshrl.u32 %v308, 7
        %v310 = vsub.s32 0, %v309
        %v311 = vrot.slane %v306, %v310
        %vm313 = vcmask 392192
        %v315 = vsel %vm313, %v299, 0
        %317 = vmatprep.subr.mxu0 0.0
        %318 = vmatpush1.msra.mxu0 0.0
        %319 = vmatprep.subr.mxu0 0.0
        %320 = vmatpush1.msra.mxu0 0.0
        %321 = vmatprep.subr.mxu0 0.0
        %322 = vmatpush1.msra.mxu0 0.0
        %323 = vmatprep.subr.mxu0 0.0
        %324 = vmatpush1.msra.mxu0 0.0
        %325 = vmatprep.subr.mxu0 0.0
        %326 = vmatpush1.msra.mxu0 0.0
        %327 = vmatprep.subr.mxu0 0.0
        %328 = vmatpush1.msra.mxu0 0.0
        %329 = vmatprep.subr.mxu0 0.0
        %330 = vmatpush1.msra.mxu0 0.0
        %331 = vmatprep.subr.mxu0 0.0
        %332 = vmatpush1.msra.mxu0 0.0
        %333 = vmatprep.subr.mxu0 0.0
        %334 = vmatpush1.msra.mxu0 0.0
        %335 = vmatprep.subr.mxu0 0.0
        %336 = vmatpush1.msra.mxu0 0.0
        %337 = vmatprep.subr.mxu0 0.0
        %338 = vmatpush1.msra.mxu0 %v305
        %339 = vmatprep.subr.mxu0 0.0
        %340 = vmatpush1.msra.mxu0 %v304
        %341 = vmatprep.subr.mxu0 0.0
        %342 = vmatpush1.msra.mxu0 %v303
        %343 = vmatprep.subr.mxu0 0.0
        %344 = vmatpush1.msra.mxu0 %v302
        %345 = vmatprep.subr.mxu0 0.0
        %346 = vmatpush1.msra.mxu0 %v301
        %347 = vmatprep.subr.mxu0 0.0
        %348 = vmatpush1.msra.mxu0 %v300
        %349 = vmatprep.subr.mxu0 0.0
        %350 = vmatpush2.msra.mxu0 0.0
        %351 = vmatprep.subr.mxu0 0.0
        %352 = vmatpush2.msra.mxu0 0.0
        %353 = vmatprep.subr.mxu0 0.0
        %354 = vmatpush2.msra.mxu0 0.0
        %355 = vmatprep.subr.mxu0 0.0
        %356 = vmatpush2.msra.mxu0 0.0
        %357 = vmatprep.subr.mxu0 0.0
        %358 = vmatpush2.msra.mxu0 0.0
        %359 = vmatprep.subr.mxu0 0.0
        %360 = vmatpush2.msra.mxu0 0.0
        %361 = vmatprep.subr.mxu0 0.0
        %362 = vmatpush2.msra.mxu0 0.0
        %363 = vmatprep.subr.mxu0 0.0
        %364 = vmatpush2.msra.mxu0 0.0
        %365 = vmatprep.subr.mxu0 0.0
        %366 = vmatpush2.msra.mxu0 0.0
        %367 = vmatprep.subr.mxu0 0.0
        %368 = vmatpush2.msra.mxu0 0.0
        %369 = vmatprep.subr.mxu0 0.0
        %370 = vmatpush2.msra.mxu0 0.0
        %371 = vmatprep.subr.mxu0 0.0
        %372 = vmatpush2.msra.mxu0 0.0
        %373 = vmatprep.subr.mxu0 0.0
        %374 = vmatpush2.msra.mxu0 0.0
        %375 = vmatprep.subr.mxu0 0.0
        %376 = vmatpush2.msra.mxu0 0.0
        %377 = vmatprep.subr.mxu0 0.0
        %378 = vmatpush2.msra.mxu0 0.0
        %379 = vmatprep.subr.mxu0 0.0
        %380 = vmatpush2.msra.mxu0 0.0
        %381 = vmatprep.mubr.f32.mxu0 0.0
        %382 = vmatmul.mubr.f32.gmra.mxu0 %v315
        %v383 = vpop.f32.mrf.mxu0
        %v384 = vadd.f32 %v311, %v383
        %v385 = vpop.f32.mrf.mxu0
        %386 = vdwg.mxu0
        %v387 = vxor.u32 %v384, 2147483648
        %v388 = vmul.f32 %v387, 1.442695
        %v389 = vpow.pop %v388
        %v390 = vadd.f32 %v389, 1.0
        %v391 = vrcp.pop %v390
        %v392 = vmul.f32 1.0, %v391
        %v393 = vtanh.pop %v384
        %395 = vrot.lane.b32.xlu0 %v393, 32
        %v396 = vpop.permute.xlu0 %395
        %v398 = vmul.f32 %v392, %v396
        %v399 = vld [vmem:[%s242] sm:$0xff]
        %401 = vrot.lane.b32.xlu0 %v399, 64
        %v402 = vpop.permute.xlu0 %401
        %v404 = vmul.f32 %v392, %v402
        %406 = vrot.lane.b32.xlu0 %v404, 64
        %v407 = vpop.permute.xlu0 %406
        %v409 = vadd.f32 %v398, %v407
        %v410 = vtanh.pop %v409
        %412 = vrot.lane.b32.xlu0 %v410, 32
        %v413 = vpop.permute.xlu0 %412
        %v415 = vmul.f32 %v392, %v413
        %417 = vrot.lane.b32.xlu0 %v415, 96
        %v418 = vpop.permute.xlu0 %417
        %421 = vrot.lane.b32.xlu0 %v409, 32
        %v422 = vpop.permute.xlu0 %421
        %vm424 = vcmask 261120
        %v425 = vsel %vm424, %v418, %v422
        %vm426 = vcmask 523264
        %427 = vst.msk [vmem:[%s280] sm:$0xff] %vm426, %v425
        %s428 = sand.u32 %s151, 1
        %s429 = scalar_lea.sflag [#allocation5], %s428
        %s430 = sand.u32 %s151, 1
        %s431 = smul.addr %s430, 8
        %s432 = scalar_lea.vmem [#allocation8], %s431
        // Predicated region
        $region49: #{tpu_custom_call.1} parent=39 // pred_check
          %p433 = pneg %p161
        $region50: #{tpu_custom_call.1} parent=39 // pred_check_branch
          %435 = sbr.rel (%p433) target = $region52
        $region51: #{tpu_custom_call.1} parent=39 // pred_region
          %s437 = ssub.s32 128, 128
          %438 = vsyncadd %s429, %s437
          %s439 = smul.addr %s23, 128
          %s440 = scalar_lea.hbm %s5, %s439
          %s442 = sshll.u32 %s432, 4
          %s443 = int_to_ptr.vmem [resolvable:$true] %s442
          %445 = dma.vmem_to_hbm [thread:$0]  %s443, 128, %s440, %s429
        $region52: #{tpu_custom_call.1} parent=39 // pred_fallthru
          _
      $region40: #{tpu_custom_call.1} parent=5 // pred_fallthru
        _
      %p446 = scmp.le.s32.totalorder 2, %s18
      // Predicated region
      $region53: #{tpu_custom_call.1} parent=5 // pred_check
        %p447 = pneg %p446
      $region54: #{tpu_custom_call.1} parent=5 // pred_check_branch
        %449 = sbr.rel (%p447) target = $region56
      $region55: #{tpu_custom_call.1} parent=5 // pred_region
        %s450 = ssub.s32 %s18, 2
        // Predicated region
        $region57: #{tpu_custom_call.1} parent=55 // pred_check
          %p451 = pneg %p167
        $region58: #{tpu_custom_call.1} parent=55 // pred_check_branch
          %453 = sbr.rel (%p451) target = $region60
        $region59: #{tpu_custom_call.1} parent=55 // pred_region
          %s454 = sand.u32 %s152, 1
          %s455 = scalar_lea.sflag [#allocation5], %s454
          %s456 = sand.u32 %s152, 1
          %s457 = smul.addr %s456, 8
          %s458 = scalar_lea.vmem [#allocation8], %s457
          %459 = dma.done %s455, 128
        $region60: #{tpu_custom_call.1} parent=55 // pred_fallthru
          _
      $region56: #{tpu_custom_call.1} parent=5 // pred_fallthru
        _
    $region6: #{tpu_custom_call.1} parent=1 // loop_footer
      %s22 = sadd.s32 1, %s18
    $region7: #{tpu_custom_call.1} parent=1 // loop_footer_branch
      %17 = sbr.rel target = $region3
    $region8: #{tpu_custom_call.1} parent=1 // loop_exit
      _
    %460 = vsyncpa [#allocation4], 1
    %s461 = scalar_lea.sflag [#allocation4], 1
    %462 = vsyncpa %s461, 1
    %463 = vsyncpa [#allocation7], 1
    %464 = vsyncpa [#allocation5], 1
    %s465 = scalar_lea.sflag [#allocation5], 1
    %466 = vsyncpa %s465, 1

</llo_original>
